<compile_context>
chip_gen: v5e
topology: v5e:2x2
jax: 0.10.0
libtpu: 0.0.40
codegen_flags: <defaults>
</compile_context>

<pallas_src>
import jax
import jax.numpy as jnp
from jax.experimental import pallas as pl
from jax.experimental.pallas import tpu as pltpu


def attention_kernel(x_ref, w_ref, ctx_ref, attw_ref):
    # x_ref:    (TB, T, H2)  block of BiLSTM outputs (native dtype)
    # w_ref:    (1, H2)      attention_fc weight row (f32)
    # ctx_ref:  (TB, H2)     context vectors
    # attw_ref: (TB, T)      attention weights (lane-dense)
    x = x_ref[...].astype(jnp.float32)               # f32 math in-register
    w = w_ref[...]                                   # (1, H2)

    # scores = <x, w> over H2 : VPU mul + lane reduce.
    # Bias omitted: softmax over T is invariant to a constant shift.
    s = jnp.sum(x * w[None, :, :], axis=-1)          # (TB, T)

    # softmax over the time axis (last axis here -> lane reduce)
    m = jnp.max(s, axis=-1, keepdims=True)           # (TB, 1)
    e = jnp.exp(s - m)                                # (TB, T)
    denom = jnp.sum(e, axis=-1, keepdims=True)        # (TB, 1)
    aw = e * pl.reciprocal(denom, approx=True)         # (TB, T)

    # context = sum_T (weights * x) : VPU mul + sublane reduce over T
    ctx = jnp.sum(aw[:, :, None] * x, axis=1)         # (TB, H2)

    ctx_ref[...] = ctx.astype(ctx_ref.dtype)
    attw_ref[...] = aw.astype(attw_ref.dtype)


def _choose_batch_tile(B, T, H2, itemsize, target_bytes=2 << 20):
    """Rows per grid step: ~MiB-scale input tile (amortizes ~0.35us/step),
    multiple of 8 when possible (sublane-aligned output blocks), divides B,
    and prefers grid >= 2 so v7x can shard the batch across both TCs."""
    max_rows = max(1, target_bytes // max(1, T * H2 * itemsize))
    candidates = [d for d in range(8, B + 1, 8) if B % d == 0 and d <= max_rows]
    if candidates:
        non_full = [d for d in candidates if d < B]
        return max(non_full) if non_full else max(candidates)
    # fallback for small / awkward B: largest divisor of B that fits
    for d in range(min(B, max_rows), 0, -1):
        if B % d == 0:
            return d
    return 1


def attention_block(lstm_outputs, weight, bias=None):
    """
    lstm_outputs: (B, T, H2)  native dtype (f32 or bf16)
    weight:       (1, H2)     torch nn.Linear(H2, 1).weight layout
    bias:         (1,)        unused: softmax shift-invariance makes it a no-op
                              for both outputs of the module.
    returns: (context (B, H2), attention_weights (B, T))
    """
    del bias  # mathematically irrelevant to the forward outputs
    B, T, H2 = lstm_outputs.shape
    w = weight.reshape(1, H2).astype(jnp.float32)

    tb = _choose_batch_tile(B, T, H2, lstm_outputs.dtype.itemsize)
    grid = (B // tb,)
    out_dtype = lstm_outputs.dtype

    ctx, attw = pl.pallas_call(
        attention_kernel,
        out_shape=(
            jax.ShapeDtypeStruct((B, H2), out_dtype),
            jax.ShapeDtypeStruct((B, T), out_dtype),
        ),
        grid_spec=pltpu.PrefetchScalarGridSpec(
            num_scalar_prefetch=0,
            grid=grid,
            in_specs=[
                pl.BlockSpec((tb, T, H2), lambda i: (i, 0, 0)),
                pl.BlockSpec((1, H2), lambda i: (0, 0)),
            ],
            out_specs=[
                pl.BlockSpec((tb, H2), lambda i: (i, 0)),
                pl.BlockSpec((tb, T), lambda i: (i, 0)),
            ],
        ),
        compiler_params=pltpu.CompilerParams(
            dimension_semantics=("parallel",)),
    )(lstm_outputs, w)

    return ctx, attw


def attention_block_ref(lstm_outputs, weight, bias):
    # pure-JAX reference matching the PyTorch forward (bias included)
    scores = jnp.einsum("btd,od->bto", lstm_outputs, weight) + bias  # (B,T,1)
    attw = jax.nn.softmax(scores, axis=1)
    ctx = jnp.sum(attw * lstm_outputs, axis=1)
    return ctx, attw.squeeze(-1)


if __name__ == "__main__":
    B, T, hidden = 16, 8, 16
    H2 = 2 * hidden

    key = jax.random.PRNGKey(0)
    k_x, k_w, k_b = jax.random.split(key, 3)

    lstm_outputs = jax.random.normal(k_x, (B, T, H2), dtype=jnp.float32)
    # deterministic init mimicking nn.Linear(H2, 1): weight (1, H2), bias (1,)
    bound = 1.0 / (H2 ** 0.5)
    weight = jax.random.uniform(k_w, (1, H2), minval=-bound, maxval=bound,
                                dtype=jnp.float32)
    bias = jax.random.uniform(k_b, (1,), minval=-bound, maxval=bound,
                              dtype=jnp.float32)

    ctx, attw = attention_block(lstm_outputs, weight, bias)
    jax.block_until_ready((ctx, attw))

    ctx_ref, attw_ref = attention_block_ref(lstm_outputs, weight, bias)
    assert ctx.shape == (B, H2) and attw.shape == (B, T)
    # approx=True reciprocal -> slightly looser tolerance than exact softmax
    assert jnp.allclose(ctx, ctx_ref, atol=2e-3, rtol=2e-3), "context mismatch"
    assert jnp.allclose(attw, attw_ref, atol=2e-3, rtol=2e-3), "attn mismatch"

    print("KERNEL_OK")
</pallas_src>

<mosaic_0001>
module attributes {stable_mosaic.version = 11 : i64} {
  func.func @attention_kernel(%arg0: i32, %arg1: memref<8x8x32xf32, #tpu.memory_space<vmem>>, %arg2: memref<1x32xf32, #tpu.memory_space<vmem>>, %arg3: memref<8x32xf32, #tpu.memory_space<vmem>>, %arg4: memref<8x8xf32, #tpu.memory_space<vmem>>) attributes {dimension_semantics = [#tpu.dimension_semantics<parallel>], iteration_bounds = array<i64: 2>, scalar_prefetch = 0 : i64, scratch_operands = 0 : i64, tpu.core_type = #tpu.core_type<tc>, window_params = [{transform_indices = @transform_0, window_bounds = array<i64: 8, 8, 32>}, {pipeline_mode = #tpu.pipeline_mode<synchronous>, transform_indices = @transform_1, window_bounds = array<i64: 1, 32>}, {transform_indices = @transform_2, window_bounds = array<i64: 8, 32>}, {transform_indices = @transform_3, window_bounds = array<i64: 8, 8>}]} {
    %c0 = arith.constant 0 : index
    %c0_0 = arith.constant 0 : index
    %c0_1 = arith.constant 0 : index
    %0 = vector.load %arg1[%c0, %c0_0, %c0_1] : memref<8x8x32xf32, #tpu.memory_space<vmem>>, vector<8x8x32xf32>
    %c0_2 = arith.constant 0 : index
    %c0_3 = arith.constant 0 : index
    %1 = vector.load %arg2[%c0_2, %c0_3] : memref<1x32xf32, #tpu.memory_space<vmem>>, vector<1x32xf32>
    %2 = vector.shape_cast %1 : vector<1x32xf32> to vector<1x1x32xf32>
    %3 = vector.broadcast %2 : vector<1x1x32xf32> to vector<8x8x32xf32>
    %4 = arith.mulf %0, %3 : vector<8x8x32xf32>
    %cst = arith.constant dense<0.000000e+00> : vector<8x8xf32>
    %5 = vector.multi_reduction <add>, %4, %cst [2] : vector<8x8x32xf32> to vector<8x8xf32>
    %cst_4 = arith.constant dense<0xFF800000> : vector<8xf32>
    %6 = vector.multi_reduction <maximumf>, %5, %cst_4 [1] : vector<8x8xf32> to vector<8xf32>
    %7 = vector.shape_cast %6 : vector<8xf32> to vector<8x1xf32>
    %8 = vector.broadcast %7 : vector<8x1xf32> to vector<8x8xf32>
    %9 = arith.subf %5, %8 : vector<8x8xf32>
    %10 = math.exp %9 : vector<8x8xf32>
    %cst_5 = arith.constant dense<0.000000e+00> : vector<8xf32>
    %11 = vector.multi_reduction <add>, %10, %cst_5 [1] : vector<8x8xf32> to vector<8xf32>
    %12 = vector.shape_cast %11 : vector<8xf32> to vector<8x1xf32>
    %13 = tpu.reciprocal %12 {approx = true} : vector<8x1xf32> -> vector<8x1xf32>
    %14 = vector.broadcast %13 : vector<8x1xf32> to vector<8x8xf32>
    %15 = arith.mulf %10, %14 : vector<8x8xf32>
    %16 = vector.shape_cast %15 : vector<8x8xf32> to vector<8x8x1xf32>
    %17 = vector.broadcast %16 : vector<8x8x1xf32> to vector<8x8x32xf32>
    %18 = arith.mulf %17, %0 : vector<8x8x32xf32>
    %cst_6 = arith.constant dense<0.000000e+00> : vector<8x32xf32>
    %19 = vector.multi_reduction <add>, %18, %cst_6 [1] : vector<8x8x32xf32> to vector<8x32xf32>
    %c0_7 = arith.constant 0 : index
    %c0_8 = arith.constant 0 : index
    %20 = vector.load %arg3[%c0_7, %c0_8] : memref<8x32xf32, #tpu.memory_space<vmem>>, vector<8x32xf32>
    tpu.vector_store %arg3[%c0_7, %c0_8], %19 {strides = array<i32>} : memref<8x32xf32, #tpu.memory_space<vmem>>, vector<8x32xf32>,
    %c0_9 = arith.constant 0 : index
    %c0_10 = arith.constant 0 : index
    %21 = vector.load %arg4[%c0_9, %c0_10] : memref<8x8xf32, #tpu.memory_space<vmem>>, vector<8x8xf32>
    tpu.vector_store %arg4[%c0_9, %c0_10], %15 {strides = array<i32>} : memref<8x8xf32, #tpu.memory_space<vmem>>, vector<8x8xf32>,
    return
  }
  func.func @transform_0(%arg0: i32) -> (i32, i32, i32) {
    %c0_i32 = arith.constant 0 : i32
    %c0_i32_0 = arith.constant 0 : i32
    %c0_i32_1 = arith.constant 0 : i32
    return %arg0, %c0_i32, %c0_i32_0 : i32, i32, i32
  }
  func.func @transform_1(%arg0: i32) -> (i32, i32) {
    %c0_i32 = arith.constant 0 : i32
    %c0_i32_0 = arith.constant 0 : i32
    %c0_i32_1 = arith.constant 0 : i32
    return %c0_i32, %c0_i32_0 : i32, i32
  }
  func.func @transform_2(%arg0: i32) -> (i32, i32) {
    %c0_i32 = arith.constant 0 : i32
    %c0_i32_0 = arith.constant 0 : i32
    return %arg0, %c0_i32 : i32, i32
  }
  func.func @transform_3(%arg0: i32) -> (i32, i32) {
    %c0_i32 = arith.constant 0 : i32
    %c0_i32_0 = arith.constant 0 : i32
    return %arg0, %c0_i32 : i32, i32
  }
}

</mosaic_0001>

<llo_original>
// kernel: tpu_custom_call.1
$region0: #{tpu_custom_call.1}
  #allocation0 [shape = 'u32[]', space=smem, size = 0x4, offset = 0x4, fixed_abs, tag = 'smem constant byte address 0x4 - core index']
  #allocation1 [shape = 'u32[72,128]{1,0:T(1,128)}', space=vmem, size = 0x9000, scoped, tag = 'internal scratch']
  %s0 = inlined_call_operand.hbm [shape: f32[16,8,32], index: 0, kind: input, shape index: {}]
  %s1 = inlined_call_operand.hbm [shape: f32[1,32], index: 1, kind: input, shape index: {}]
  %s2 = inlined_call_operand.hbm [shape: f32[16,32], index: 2, kind: output, shape index: {0}]
  %s3 = inlined_call_operand.vmem [shape: f32[16,8], index: 3, kind: output, shape index: {1}]
  %4 = xla_tuple %s2, %s3
  %s5 = sld [smem:[#allocation0]]
  $region57: #{tpu_custom_call.1} parent=0
    _
  %s7 = ssub.s32 1, %s5
  %s8 = scalar_select 0, %s7, %s5
  $region1: #{tpu_custom_call.1} parent=0
    #allocation2 [shape = 'u8[65536]{0}', space=vmem, size = 0x10000, scoped, tag = 'input window, operand 0']
    #allocation3 [shape = 's32[2]{0}', space=sflag, size = 0x8, scoped, tag = 'scoped memory for tpu_custom_call.1']
    #allocation4 [shape = 's32[2]{0}', space=sflag, size = 0x8, scoped, tag = 'scoped memory for tpu_custom_call.1']
    #allocation5 [shape = 'u8[512]{0}', space=vmem, size = 0x400, scoped, tag = 'input window, operand 1, single buffered']
    #allocation6 [shape = 's32[1]{0}', space=sflag, size = 0x4, scoped, tag = 'scoped memory for tpu_custom_call.1']
    #allocation7 [shape = 'u8[8192]{0}', space=vmem, size = 0x2000, scoped, tag = 'output window, operand 0']
    %9 = vsyncpa [#allocation3], 0
    %s10 = scalar_lea.sflag [#allocation3], 1
    %11 = vsyncpa %s10, 0
    %12 = vsyncpa [#allocation6], 0
    %13 = vsyncpa [#allocation4], 0
    %s14 = scalar_lea.sflag [#allocation4], 1
    %15 = vsyncpa %s14, 0
    loop: start=0, step=1, limit=4
    $region2: #{tpu_custom_call.1} parent=1 // loop_pre_header
      _
    $region3: #{tpu_custom_call.1} parent=1 // loop_header
      %s17 = sphi 0, %s21
      %p18 = scmp.ge.s32.totalorder %s17, 4
      %s27 = sphi 0, %s29
      %s30 = sphi 0, %s27
      %s31 = sphi 0, %s30
      %s47 = sphi 0, %s31
      %s51 = sphi 0, %s51
      %s53 = sphi 0, %s51
      %s54 = sphi 0, %s53
      %s68 = sphi 0, %s54
      %s74 = sphi 0, %s76
      %s77 = sphi 0, %s74
      %s78 = sphi 0, %s77
      %s94 = sphi 0, %s78
      %s100 = sphi 0, %s102
      %s103 = sphi 0, %s100
      %s104 = sphi 0, %s103
      %s120 = sphi 0, %s104
    $region4: #{tpu_custom_call.1} parent=1 // loop_header_branch
      %20 = sbr.rel (%p18) target = $region8
    $region5: #{tpu_custom_call.1} parent=1 // loop_body
      %s22 = ssub.s32 %s17, 1
      %s23 = ssub.s32 %s17, 2
      %s24 = sadd.s32 %s17, 1
      %s25 = ssub.s32 %s17, %s24
      %p26 = scmp.eq.s32.totalorder %s25, 0
      %s28 = sadd.s32 %s27, 1
      %s29 = scalar_select %p26, %s27, %s28
      %p32 = pneg %p26
      %p33 = scmp.eq.s32.totalorder %s17, 1
      %p34 = por %p32, %p33
      %p35 = scmp.ne.s32.totalorder %s27, %s30
      %p36 = scmp.eq.s32.totalorder %s17, 0
      %p37 = por %p35, %p36
      %p38 = scmp.ne.s32.totalorder %s27, %s30
      %p39 = scmp.eq.s32.totalorder %s22, 1
      %p40 = por %p38, %p39
      %p41 = scmp.ne.s32.totalorder %s30, %s31
      %p42 = scmp.eq.s32.totalorder %s22, 0
      %p43 = por %p41, %p42
      %p44 = scmp.ne.s32.totalorder %s30, %s31
      %p45 = scmp.eq.s32.totalorder %s23, 1
      %p46 = por %p44, %p45
      %p48 = scmp.ne.s32.totalorder %s31, %s47
      %p49 = scmp.eq.s32.totalorder %s23, 0
      %p50 = por %p48, %p49
      %s52 = sadd.s32 %s51, 1
      %p55 = scmp.eq.s32.totalorder %s17, 1
      %p56 = scmp.ne.s32.totalorder %s51, %s53
      %p57 = scmp.eq.s32.totalorder %s17, 0
      %p58 = por %p56, %p57
      %p59 = scmp.ne.s32.totalorder %s51, %s53
      %p60 = scmp.eq.s32.totalorder %s22, 1
      %p61 = por %p59, %p60
      %p62 = scmp.ne.s32.totalorder %s53, %s54
      %p63 = scmp.eq.s32.totalorder %s22, 0
      %p64 = por %p62, %p63
      %p65 = scmp.ne.s32.totalorder %s53, %s54
      %p66 = scmp.eq.s32.totalorder %s23, 1
      %p67 = por %p65, %p66
      %p69 = scmp.ne.s32.totalorder %s54, %s68
      %p70 = scmp.eq.s32.totalorder %s23, 0
      %p71 = por %p69, %p70
      %s72 = ssub.s32 %s17, %s24
      %p73 = scmp.eq.s32.totalorder %s72, 0
      %s75 = sadd.s32 %s74, 1
      %s76 = scalar_select %p73, %s74, %s75
      %p79 = pneg %p73
      %p80 = scmp.eq.s32.totalorder %s17, 1
      %p81 = por %p79, %p80
      %p82 = scmp.ne.s32.totalorder %s74, %s77
      %p83 = scmp.eq.s32.totalorder %s17, 0
      %p84 = por %p82, %p83
      %p85 = scmp.ne.s32.totalorder %s74, %s77
      %p86 = scmp.eq.s32.totalorder %s22, 1
      %p87 = por %p85, %p86
      %p88 = scmp.ne.s32.totalorder %s77, %s78
      %p89 = scmp.eq.s32.totalorder %s22, 0
      %p90 = por %p88, %p89
      %p91 = scmp.ne.s32.totalorder %s77, %s78
      %p92 = scmp.eq.s32.totalorder %s23, 1
      %p93 = por %p91, %p92
      %p95 = scmp.ne.s32.totalorder %s78, %s94
      %p96 = scmp.eq.s32.totalorder %s23, 0
      %p97 = por %p95, %p96
      %s98 = ssub.s32 %s17, %s24
      %p99 = scmp.eq.s32.totalorder %s98, 0
      %s101 = sadd.s32 %s100, 1
      %s102 = scalar_select %p99, %s100, %s101
      %p105 = pneg %p99
      %p106 = scmp.eq.s32.totalorder %s17, 1
      %p107 = por %p105, %p106
      %p108 = scmp.ne.s32.totalorder %s100, %s103
      %p109 = scmp.eq.s32.totalorder %s17, 0
      %p110 = por %p108, %p109
      %p111 = scmp.ne.s32.totalorder %s100, %s103
      %p112 = scmp.eq.s32.totalorder %s22, 1
      %p113 = por %p111, %p112
      %p114 = scmp.ne.s32.totalorder %s103, %s104
      %p115 = scmp.eq.s32.totalorder %s22, 0
      %p116 = por %p114, %p115
      %p117 = scmp.ne.s32.totalorder %s103, %s104
      %p118 = scmp.eq.s32.totalorder %s23, 1
      %p119 = por %p117, %p118
      %p121 = scmp.ne.s32.totalorder %s104, %s120
      %p122 = scmp.eq.s32.totalorder %s23, 0
      %p123 = por %p121, %p122
      %p124 = scmp.le.s32.totalorder 1, %s17
      %p125 = scmp.lt.s32.totalorder %s17, 3
      %p126 = pnand %p124, %p125
      %p127 = pneg %p126
      // Predicated region
      $region9: #{tpu_custom_call.1} parent=5 // pred_check
        _
      $region10: #{tpu_custom_call.1} parent=5 // pred_check_branch
        %129 = sbr.rel (%p126) target = $region12
      $region11: #{tpu_custom_call.1} parent=5 // pred_region
        %s130 = ssub.s32 %s17, 1
        // Predicated region
        $region13: #{tpu_custom_call.1} parent=11 // pred_check
          %p131 = pneg %p64
        $region14: #{tpu_custom_call.1} parent=11 // pred_check_branch
          %133 = sbr.rel (%p131) target = $region16
        $region15: #{tpu_custom_call.1} parent=11 // pred_region
          %135 = vsyncadd [#allocation6], 0
          %s137 = sshll.u32 %s1, 4
          %s138 = int_to_ptr.hbm [resolvable:$true] %s137
          %s139 = sshll.u32 [#allocation5], 4
          %s140 = int_to_ptr.vmem [resolvable:$true] %s139
          %142 = dma.hbm_to_vmem [thread:$0]  %s138, 16, %s140, [#allocation6]
        $region16: #{tpu_custom_call.1} parent=11 // pred_fallthru
          _
      $region12: #{tpu_custom_call.1} parent=5 // pred_fallthru
        _
      %p143 = scmp.lt.s32.totalorder %s17, 2
      // Predicated region
      $region17: #{tpu_custom_call.1} parent=5 // pred_check
        %p144 = pneg %p143
      $region18: #{tpu_custom_call.1} parent=5 // pred_check_branch
        %146 = sbr.rel (%p144) target = $region20
      $region19: #{tpu_custom_call.1} parent=5 // pred_region
        // Predicated region
        $region21: #{tpu_custom_call.1} parent=19 // pred_check
          %p147 = pneg %p37
        $region22: #{tpu_custom_call.1} parent=19 // pred_check_branch
          %149 = sbr.rel (%p147) target = $region24
        $region23: #{tpu_custom_call.1} parent=19 // pred_region
          %s150 = sand.u32 %s27, 1
          %s151 = scalar_lea.sflag [#allocation3], %s150
          %s152 = sand.u32 %s27, 1
          %s153 = smul.addr %s152, 64
          %s154 = scalar_lea.vmem [#allocation2], %s153
          %s155 = smul.u32 8, %s17
          %157 = vsyncadd %s151, 0
          %s158 = smul.addr %s155, 8
          %s159 = scalar_lea.hbm %s0, %s158
          %s160 = sshll.u32 %s159, 4
          %s161 = int_to_ptr.hbm [resolvable:$true] %s160
          %s162 = sshll.u32 %s154, 4
          %s163 = int_to_ptr.vmem [resolvable:$true] %s162
          %168 = dma.hbm_to_vmem [thread:$0]  %s161, 1024, %s163, %s151, 128, 128, 8
        $region24: #{tpu_custom_call.1} parent=19 // pred_fallthru
          _
      $region20: #{tpu_custom_call.1} parent=5 // pred_fallthru
        _
      %p169 = scmp.le.s32.totalorder 1, %s17
      %p170 = scmp.lt.s32.totalorder %s17, 3
      %p171 = pnand %p169, %p170
      %p172 = pneg %p171
      // Predicated region
      $region25: #{tpu_custom_call.1} parent=5 // pred_check
        _
      $region26: #{tpu_custom_call.1} parent=5 // pred_check_branch
        %174 = sbr.rel (%p171) target = $region28
      $region27: #{tpu_custom_call.1} parent=5 // pred_region
        %s175 = ssub.s32 %s17, 1
        %s176 = sand.u32 %s30, 1
        %s177 = scalar_lea.sflag [#allocation3], %s176
        %s178 = sand.u32 %s30, 1
        %s179 = smul.addr %s178, 64
        %s180 = scalar_lea.vmem [#allocation2], %s179
        // Predicated region
        $region29: #{tpu_custom_call.1} parent=27 // pred_check
          %p181 = pneg %p43
        $region30: #{tpu_custom_call.1} parent=27 // pred_check_branch
          %183 = sbr.rel (%p181) target = $region32
        $region31: #{tpu_custom_call.1} parent=27 // pred_region
          %185 = dma.done %s177, 1024
        $region32: #{tpu_custom_call.1} parent=27 // pred_fallthru
          _
        // Predicated region
        $region33: #{tpu_custom_call.1} parent=27 // pred_check
          %p186 = pneg %p64
        $region34: #{tpu_custom_call.1} parent=27 // pred_check_branch
          %188 = sbr.rel (%p186) target = $region36
        $region35: #{tpu_custom_call.1} parent=27 // pred_region
          %190 = dma.done [#allocation6], 16
        $region36: #{tpu_custom_call.1} parent=27 // pred_fallthru
          _
        %s191 = sand.u32 %s30, 1
        %s192 = scalar_lea.sflag [#allocation3], %s191
        %s193 = sand.u32 %s30, 1
        %s194 = smul.addr %s193, 64
        %s195 = scalar_lea.vmem [#allocation2], %s194
        %p196 = pneg %p43
        %p197 = pneg %p40
        %p198 = pneg %p64
        %p199 = pneg %p61
        %p200 = pneg %p90
        %p201 = pneg %p87
        %s202 = sand.u32 %s77, 1
        %s203 = scalar_lea.sflag [#allocation4], %s202
        %s204 = sand.u32 %s77, 1
        %s205 = smul.addr %s204, 8
        %s206 = scalar_lea.vmem [#allocation7], %s205
        %p207 = pneg %p116
        %p208 = pneg %p113
        %p209 = scmp.lt.s32.totalorder %s22, 1
        %s210 = scalar_select %p209, %s22, 1
        %s211 = smul.addr %s210, 8
        %s212 = scalar_lea.vmem %s3, %s211
        %s213 = smul.u32 8, %s22
        %p214 = scmp.lt.s32.totalorder %s22, 1
        %s215 = scalar_select %p214, %s22, 1
        %s216 = smul.addr %s215, 8
        %s217 = scalar_lea.vmem %s3, %s216
        %v218 = vld [vmem:[%s180] sm:$0xff]
        %v219 = vld [vmem:[%s180 + $0x8] sm:$0xff]
        %v220 = vld [vmem:[%s180 + $0x10] sm:$0xff]
        %v221 = vld [vmem:[%s180 + $0x18] sm:$0xff]
        %v222 = vld [vmem:[%s180 + $0x20] sm:$0xff]
        %v223 = vld [vmem:[%s180 + $0x28] sm:$0xff]
        %v224 = vld [vmem:[%s180 + $0x30] sm:$0xff]
        %v225 = vld [vmem:[%s180 + $0x38] sm:$0xff]
        %v226 = vld [vmem:[#allocation5] sm:$0x1]
        %v228 = vperm.slane %v226, 0
        %v230 = vmul.f32 %v218, %v228
        %v231 = vmul.f32 %v219, %v228
        %v232 = vmul.f32 %v220, %v228
        %v233 = vmul.f32 %v221, %v228
        %v234 = vmul.f32 %v222, %v228
        %v235 = vmul.f32 %v223, %v228
        %v236 = vmul.f32 %v224, %v228
        %v237 = vmul.f32 %v225, %v228
        %vm238 = vcmask 261120
        %v239 = vsel %vm238, %v230, 0.0
        %240 = vadd.xlane.f32.xlu0 %v239
        %v241 = vpop.xlane.xlu0 %240
        %v242 = vsel %vm238, %v231, 0.0
        %243 = vadd.xlane.f32.xlu0 %v242
        %v244 = vpop.xlane.xlu0 %243
        %v245 = vsel %vm238, %v232, 0.0
        %246 = vadd.xlane.f32.xlu0 %v245
        %v247 = vpop.xlane.xlu0 %246
        %v248 = vsel %vm238, %v233, 0.0
        %249 = vadd.xlane.f32.xlu0 %v248
        %v250 = vpop.xlane.xlu0 %249
        %v251 = vsel %vm238, %v234, 0.0
        %252 = vadd.xlane.f32.xlu0 %v251
        %v253 = vpop.xlane.xlu0 %252
        %v254 = vsel %vm238, %v235, 0.0
        %255 = vadd.xlane.f32.xlu0 %v254
        %v256 = vpop.xlane.xlu0 %255
        %v257 = vsel %vm238, %v236, 0.0
        %258 = vadd.xlane.f32.xlu0 %v257
        %v259 = vpop.xlane.xlu0 %258
        %v260 = vsel %vm238, %v237, 0.0
        %261 = vadd.xlane.f32.xlu0 %v260
        %v262 = vpop.xlane.xlu0 %261
        %v271 = vlaneseq
        %v272 = vand.u32 %v271, 127
        %v273 = vperm.slane %v241, %v272
        %v274 = vperm.slane %v244, %v272
        %v275 = vperm.slane %v247, %v272
        %v276 = vperm.slane %v250, %v272
        %v277 = vperm.slane %v253, %v272
        %v278 = vperm.slane %v256, %v272
        %v279 = vperm.slane %v259, %v272
        %v280 = vperm.slane %v262, %v272
        %vm281 = vcmask 1041409
        %v282 = vsel %vm281, %v274, %v273
        %vm283 = vcmask 1042434
        %v284 = vsel %vm283, %v275, %v282
        %vm285 = vcmask 1043459
        %v286 = vsel %vm285, %v276, %v284
        %vm287 = vcmask 1044484
        %v288 = vsel %vm287, %v277, %v286
        %vm289 = vcmask 1045509
        %v290 = vsel %vm289, %v278, %v288
        %vm291 = vcmask 1046534
        %v292 = vsel %vm291, %v279, %v290
        %vm293 = vcmask 1047559
        %v294 = vsel %vm293, %v280, %v292
        %vm296 = vcmask 64512
        %v297 = vsel %vm296, %v294, -inf
        %298 = vmax.xlane.f32.xlu0 %v297
        %v299 = vpop.xlane.xlu0 %298
        %v301 = vperm.slane %v299, 0
        %v302 = vperm.slane %v299, 1
        %v303 = vperm.slane %v299, 2
        %v304 = vperm.slane %v299, 3
        %v305 = vperm.slane %v299, 4
        %v306 = vperm.slane %v299, 5
        %v307 = vperm.slane %v299, 6
        %v308 = vperm.slane %v299, 7
        %v317 = vsub.f32 %v241, %v301
        %v318 = vsub.f32 %v244, %v302
        %v319 = vsub.f32 %v247, %v303
        %v320 = vsub.f32 %v250, %v304
        %v321 = vsub.f32 %v253, %v305
        %v322 = vsub.f32 %v256, %v306
        %v323 = vsub.f32 %v259, %v307
        %v324 = vsub.f32 %v262, %v308
        %v325 = vmul.f32 %v317, 1.442695
        %v326 = vpow.pop %v325
        %v327 = vmul.f32 %v318, 1.442695
        %v328 = vpow.pop %v327
        %v329 = vmul.f32 %v319, 1.442695
        %v330 = vpow.pop %v329
        %v331 = vmul.f32 %v320, 1.442695
        %v332 = vpow.pop %v331
        %v333 = vmul.f32 %v321, 1.442695
        %v334 = vpow.pop %v333
        %v335 = vmul.f32 %v322, 1.442695
        %v336 = vpow.pop %v335
        %v337 = vmul.f32 %v323, 1.442695
        %v338 = vpow.pop %v337
        %v339 = vmul.f32 %v324, 1.442695
        %v340 = vpow.pop %v339
        %349 = vset.pattern.permute.xlu0 0
        %350 = vperm.xlu0 %349, %v326
        %v351 = vpop.permute.xlu0 %350
        %352 = vset.pattern.permute.xlu0 0
        %353 = vperm.xlu0 %352, %v328
        %v354 = vpop.permute.xlu0 %353
        %355 = vset.pattern.permute.xlu0 0
        %356 = vperm.xlu0 %355, %v330
        %v357 = vpop.permute.xlu0 %356
        %358 = vset.pattern.permute.xlu0 0
        %359 = vperm.xlu0 %358, %v332
        %v360 = vpop.permute.xlu0 %359
        %361 = vset.pattern.permute.xlu0 0
        %362 = vperm.xlu0 %361, %v334
        %v363 = vpop.permute.xlu0 %362
        %364 = vset.pattern.permute.xlu0 0
        %365 = vperm.xlu0 %364, %v336
        %v366 = vpop.permute.xlu0 %365
        %367 = vset.pattern.permute.xlu0 0
        %368 = vperm.xlu0 %367, %v338
        %v369 = vpop.permute.xlu0 %368
        %370 = vset.pattern.permute.xlu0 0
        %371 = vperm.xlu0 %370, %v340
        %v372 = vpop.permute.xlu0 %371
        %v373 = vperm.slane %v351, %v272
        %v374 = vperm.slane %v354, %v272
        %v375 = vperm.slane %v357, %v272
        %v376 = vperm.slane %v360, %v272
        %v377 = vperm.slane %v363, %v272
        %v378 = vperm.slane %v366, %v272
        %v379 = vperm.slane %v369, %v272
        %v380 = vperm.slane %v372, %v272
        %v381 = vsel %vm281, %v374, %v373
        %v382 = vsel %vm283, %v375, %v381
        %v383 = vsel %vm285, %v376, %v382
        %v384 = vsel %vm287, %v377, %v383
        %v385 = vsel %vm289, %v378, %v384
        %v386 = vsel %vm291, %v379, %v385
        %v387 = vsel %vm293, %v380, %v386
        %v389 = vsel %vm296, %v387, 0.0
        %390 = vadd.xlane.f32.xlu0 %v389
        %v391 = vpop.xlane.xlu0 %390
        %v392 = vrcp.pop %v391
        %v394 = vperm.slane %v392, 0
        %v395 = vperm.slane %v392, 1
        %v396 = vperm.slane %v392, 2
        %v397 = vperm.slane %v392, 3
        %v398 = vperm.slane %v392, 4
        %v399 = vperm.slane %v392, 5
        %v400 = vperm.slane %v392, 6
        %v401 = vperm.slane %v392, 7
        %v410 = vmul.f32 %v326, %v394
        %v411 = vmul.f32 %v328, %v395
        %v412 = vmul.f32 %v330, %v396
        %v413 = vmul.f32 %v332, %v397
        %v414 = vmul.f32 %v334, %v398
        %v415 = vmul.f32 %v336, %v399
        %v416 = vmul.f32 %v338, %v400
        %v417 = vmul.f32 %v340, %v401
        %419 = vset.pattern.permute.xlu0 0
        %420 = vperm.xlu0 %419, %v410
        %v421 = vpop.permute.xlu0 %420
        %424 = vset.pattern.permute.xlu0 0
        %425 = vperm.xlu0 %424, %v411
        %v426 = vpop.permute.xlu0 %425
        %429 = vset.pattern.permute.xlu0 0
        %430 = vperm.xlu0 %429, %v412
        %v431 = vpop.permute.xlu0 %430
        %434 = vset.pattern.permute.xlu0 0
        %435 = vperm.xlu0 %434, %v413
        %v436 = vpop.permute.xlu0 %435
        %439 = vset.pattern.permute.xlu0 0
        %440 = vperm.xlu0 %439, %v414
        %v441 = vpop.permute.xlu0 %440
        %444 = vset.pattern.permute.xlu0 0
        %445 = vperm.xlu0 %444, %v415
        %v446 = vpop.permute.xlu0 %445
        %449 = vset.pattern.permute.xlu0 0
        %450 = vperm.xlu0 %449, %v416
        %v451 = vpop.permute.xlu0 %450
        %454 = vset.pattern.permute.xlu0 0
        %455 = vperm.xlu0 %454, %v417
        %v456 = vpop.permute.xlu0 %455
        %v458 = vmul.f32 %v421, %v218
        %v459 = vmul.f32 %v426, %v219
        %v460 = vmul.f32 %v431, %v220
        %v461 = vmul.f32 %v436, %v221
        %v462 = vmul.f32 %v441, %v222
        %v463 = vmul.f32 %v446, %v223
        %v464 = vmul.f32 %v451, %v224
        %v465 = vmul.f32 %v456, %v225
        %v466 = vsel %vm238, %v458, 0.0
        %v467 = vrot.slane %v466, 4
        %v468 = vadd.f32 %v466, %v467
        %v469 = vrot.slane %v468, 2
        %v470 = vadd.f32 %v468, %v469
        %v471 = vrot.slane %v470, 1
        %v472 = vadd.f32 %v470, %v471
        %v473 = vsel %vm238, %v459, 0.0
        %v474 = vrot.slane %v473, 4
        %v475 = vadd.f32 %v473, %v474
        %v476 = vrot.slane %v475, 2
        %v477 = vadd.f32 %v475, %v476
        %v478 = vrot.slane %v477, 1
        %v479 = vadd.f32 %v477, %v478
        %v480 = vsel %vm238, %v460, 0.0
        %v481 = vrot.slane %v480, 4
        %v482 = vadd.f32 %v480, %v481
        %v483 = vrot.slane %v482, 2
        %v484 = vadd.f32 %v482, %v483
        %v485 = vrot.slane %v484, 1
        %v486 = vadd.f32 %v484, %v485
        %v487 = vsel %vm238, %v461, 0.0
        %v488 = vrot.slane %v487, 4
        %v489 = vadd.f32 %v487, %v488
        %v490 = vrot.slane %v489, 2
        %v491 = vadd.f32 %v489, %v490
        %v492 = vrot.slane %v491, 1
        %v493 = vadd.f32 %v491, %v492
        %v494 = vsel %vm238, %v462, 0.0
        %v495 = vrot.slane %v494, 4
        %v496 = vadd.f32 %v494, %v495
        %v497 = vrot.slane %v496, 2
        %v498 = vadd.f32 %v496, %v497
        %v499 = vrot.slane %v498, 1
        %v500 = vadd.f32 %v498, %v499
        %v501 = vsel %vm238, %v463, 0.0
        %v502 = vrot.slane %v501, 4
        %v503 = vadd.f32 %v501, %v502
        %v504 = vrot.slane %v503, 2
        %v505 = vadd.f32 %v503, %v504
        %v506 = vrot.slane %v505, 1
        %v507 = vadd.f32 %v505, %v506
        %v508 = vsel %vm238, %v464, 0.0
        %v509 = vrot.slane %v508, 4
        %v510 = vadd.f32 %v508, %v509
        %v511 = vrot.slane %v510, 2
        %v512 = vadd.f32 %v510, %v511
        %v513 = vrot.slane %v512, 1
        %v514 = vadd.f32 %v512, %v513
        %v515 = vsel %vm238, %v465, 0.0
        %v516 = vrot.slane %v515, 4
        %v517 = vadd.f32 %v515, %v516
        %v518 = vrot.slane %v517, 2
        %v519 = vadd.f32 %v517, %v518
        %v520 = vrot.slane %v519, 1
        %v521 = vadd.f32 %v519, %v520
        %v530 = vsel %vm281, %v479, %v472
        %v531 = vsel %vm283, %v486, %v530
        %v532 = vsel %vm285, %v493, %v531
        %v533 = vsel %vm287, %v500, %v532
        %v534 = vsel %vm289, %v507, %v533
        %v535 = vsel %vm291, %v514, %v534
        %v536 = vsel %vm293, %v521, %v535
        %538 = vst.msk [vmem:[%s206] sm:$0xff] %vm238, %v536
        %v539 = vperm.slane %v421, %v272
        %v540 = vperm.slane %v426, %v272
        %v541 = vperm.slane %v431, %v272
        %v542 = vperm.slane %v436, %v272
        %v543 = vperm.slane %v441, %v272
        %v544 = vperm.slane %v446, %v272
        %v545 = vperm.slane %v451, %v272
        %v546 = vperm.slane %v456, %v272
        %v547 = vsel %vm281, %v540, %v539
        %v548 = vsel %vm283, %v541, %v547
        %v549 = vsel %vm285, %v542, %v548
        %v550 = vsel %vm287, %v543, %v549
        %v551 = vsel %vm289, %v544, %v550
        %v552 = vsel %vm291, %v545, %v551
        %v553 = vsel %vm293, %v546, %v552
        %555 = vst.msk [vmem:[%s217] sm:$0xff] %vm296, %v553
        %s556 = sand.u32 %s77, 1
        %s557 = scalar_lea.sflag [#allocation4], %s556
        %s558 = sand.u32 %s77, 1
        %s559 = smul.addr %s558, 8
        %s560 = scalar_lea.vmem [#allocation7], %s559
        %p561 = scmp.lt.s32.totalorder %s22, 1
        %s562 = scalar_select %p561, %s22, 1
        %s563 = smul.addr %s562, 8
        %s564 = scalar_lea.vmem %s3, %s563
        // Predicated region
        $region37: #{tpu_custom_call.1} parent=27 // pred_check
          %p565 = pneg %p87
        $region38: #{tpu_custom_call.1} parent=27 // pred_check_branch
          %567 = sbr.rel (%p565) target = $region40
        $region39: #{tpu_custom_call.1} parent=27 // pred_region
          %569 = vsyncadd %s557, 0
          %s570 = smul.addr %s22, 8
          %s571 = scalar_lea.hbm %s2, %s570
          %s573 = sshll.u32 %s560, 4
          %s574 = int_to_ptr.vmem [resolvable:$true] %s573
          %s575 = sshll.u32 %s571, 4
          %s576 = int_to_ptr.hbm [resolvable:$true] %s575
          %578 = dma.vmem_to_hbm [thread:$0]  %s574, 128, %s576, %s557
        $region40: #{tpu_custom_call.1} parent=27 // pred_fallthru
          _
        // Predicated region
        $region41: #{tpu_custom_call.1} parent=27 // pred_check
          %p579 = pneg %p113
        $region42: #{tpu_custom_call.1} parent=27 // pred_check_branch
          %581 = sbr.rel (%p579) target = $region44
        $region43: #{tpu_custom_call.1} parent=27 // pred_region
          _
        $region44: #{tpu_custom_call.1} parent=27 // pred_fallthru
          _
      $region28: #{tpu_custom_call.1} parent=5 // pred_fallthru
        _
      %p582 = scmp.le.s32.totalorder 2, %s17
      // Predicated region
      $region45: #{tpu_custom_call.1} parent=5 // pred_check
        %p583 = pneg %p582
      $region46: #{tpu_custom_call.1} parent=5 // pred_check_branch
        %585 = sbr.rel (%p583) target = $region48
      $region47: #{tpu_custom_call.1} parent=5 // pred_region
        %s586 = ssub.s32 %s17, 2
        // Predicated region
        $region49: #{tpu_custom_call.1} parent=47 // pred_check
          %p587 = pneg %p93
        $region50: #{tpu_custom_call.1} parent=47 // pred_check_branch
          %589 = sbr.rel (%p587) target = $region52
        $region51: #{tpu_custom_call.1} parent=47 // pred_region
          %s590 = sand.u32 %s78, 1
          %s591 = scalar_lea.sflag [#allocation4], %s590
          %s592 = sand.u32 %s78, 1
          %s593 = smul.addr %s592, 8
          %s594 = scalar_lea.vmem [#allocation7], %s593
          %596 = dma.done %s591, 128
        $region52: #{tpu_custom_call.1} parent=47 // pred_fallthru
          _
        // Predicated region
        $region53: #{tpu_custom_call.1} parent=47 // pred_check
          %p597 = pneg %p119
        $region54: #{tpu_custom_call.1} parent=47 // pred_check_branch
          %599 = sbr.rel (%p597) target = $region56
        $region55: #{tpu_custom_call.1} parent=47 // pred_region
          %p600 = scmp.lt.s32.totalorder %s23, 1
          %s601 = scalar_select %p600, %s23, 1
          %s602 = smul.addr %s601, 8
          %s603 = scalar_lea.vmem %s3, %s602
        $region56: #{tpu_custom_call.1} parent=47 // pred_fallthru
          _
      $region48: #{tpu_custom_call.1} parent=5 // pred_fallthru
        _
    $region6: #{tpu_custom_call.1} parent=1 // loop_footer
      %s21 = sadd.s32 1, %s17
    $region7: #{tpu_custom_call.1} parent=1 // loop_footer_branch
      %16 = sbr.rel target = $region3
    $region8: #{tpu_custom_call.1} parent=1 // loop_exit
      _
    %604 = vsyncpa [#allocation3], 1
    %s605 = scalar_lea.sflag [#allocation3], 1
    %606 = vsyncpa %s605, 1
    %607 = vsyncpa [#allocation6], 1
    %608 = vsyncpa [#allocation4], 1
    %s609 = scalar_lea.sflag [#allocation4], 1
    %610 = vsyncpa %s609, 1

</llo_original>
